<compile_context>
chip_gen: v7x
topology: tpu7x:2x2x1
jax: 0.10.0
libtpu: 0.0.40
codegen_flags: <defaults>
</compile_context>

<pallas_src>
import jax
import jax.numpy as jnp
from jax.experimental import pallas as pl
from jax.experimental.pallas import tpu as pltpu


def _ff_norm_kernel(u_ref, f_ref, w1u_ref, w2u_ref, w1f_ref, w2f_ref,
                    ou_ref, of_ref):
    """One grid step = `batches_per_block` whole normalization groups per stream.

    u_ref / f_ref : [BB, N, E] f32 activations.
    w1*_ref       : [E, H]  (compute dtype: bf16 or f32)  — Linear(E->H), stored [in,out].
    w2*_ref       : [H, E]  (compute dtype)               — Linear(H->E), stored [in,out].
    ou_ref/of_ref : [BB, N, E] outputs = Norm(FF(x) + x), norm over dims (1,2) per batch.
    """

    def one_stream(x_ref, w1_ref, w2_ref, o_ref):
        x = x_ref[...].astype(jnp.float32)          # residual / stats in f32
        bb, n, e = x.shape
        cdt = w1_ref.dtype                          # MXU operand dtype

        # FF: Linear -> ReLU -> Linear on the MXU (f32 accumulate); residual in f32.
        x2 = x.reshape(bb * n, e)
        h = jnp.maximum(
            jnp.dot(x2.astype(cdt), w1_ref[...],
                    preferred_element_type=jnp.float32), 0.0)
        y2 = jnp.dot(h.astype(cdt), w2_ref[...],
                     preferred_element_type=jnp.float32) + x2
        y = y2.reshape(bb, n, e)

        # "layer" normalization: per-batch mean/var over (N, E).
        # Structured axis reductions (no masks/iotas); two-pass centered variance
        # with torch.var's unbiased (n-1) denominator.
        n_group = float(n * e)
        mean = jnp.sum(jnp.sum(y, axis=2, keepdims=True),
                       axis=1, keepdims=True) * (1.0 / n_group)
        d = y - mean
        var = jnp.sum(jnp.sum(d * d, axis=2, keepdims=True),
                      axis=1, keepdims=True) * (1.0 / (n_group - 1.0))
        # rsqrt runs in the (otherwise idle) EUP slot.
        o_ref[...] = (d * jax.lax.rsqrt(var + 1e-5)).astype(o_ref.dtype)

    one_stream(u_ref, w1u_ref, w2u_ref, ou_ref)
    one_stream(f_ref, w1f_ref, w2f_ref, of_ref)


def ff_and_norm_sublayer(u, f, w1_u, w2_u, w1_f, w2_f, *,
                         compute_dtype=jnp.bfloat16, batches_per_block=1):
    """u, f: [B, N, E];  w1_*: [E, H];  w2_*: [H, E]  (weights already [in, out])."""
    B, N, E = u.shape
    H = w1_u.shape[1]
    assert B % batches_per_block == 0, "batches_per_block must divide B"
    BB = batches_per_block
    out_dtype = u.dtype

    # Blocks always contain whole normalization groups (multiples of N rows).
    act_spec = pl.BlockSpec((BB, N, E), lambda g: (g, 0, 0))
    w1_spec = pl.BlockSpec((E, H), lambda g: (0, 0))
    w2_spec = pl.BlockSpec((H, E), lambda g: (0, 0))

    w_itemsize = jnp.dtype(compute_dtype).itemsize
    flops = 2 * (4 * B * N * E * H + 8 * B * N * E)       # two matmuls + elementwise, x2 streams
    transcendentals = 2 * B                                # one rsqrt per (batch, stream) group
    bytes_accessed = (2 * B * N * E * 4                    # u, f reads (f32)
                      + 2 * B * N * E * jnp.dtype(out_dtype).itemsize
                      + 2 * (E * H + H * E) * w_itemsize)  # all four weight matrices

    out_u, out_f = pl.pallas_call(
        _ff_norm_kernel,
        out_shape=(jax.ShapeDtypeStruct((B, N, E), out_dtype),
                   jax.ShapeDtypeStruct((B, N, E), out_dtype)),
        grid=(B // BB,),
        in_specs=[act_spec, act_spec, w1_spec, w2_spec, w1_spec, w2_spec],
        out_specs=(act_spec, act_spec),
        compiler_params=pltpu.CompilerParams(
            dimension_semantics=("parallel",),             # shards across v7x's 2 TCs
            vmem_limit_bytes=32 * 1024 * 1024),
        cost_estimate=pl.CostEstimate(
            flops=int(flops),
            transcendentals=int(transcendentals),
            bytes_accessed=int(bytes_accessed)),
    )(u.astype(jnp.float32), f.astype(jnp.float32),
      w1_u.astype(compute_dtype), w2_u.astype(compute_dtype),
      w1_f.astype(compute_dtype), w2_f.astype(compute_dtype))

    return out_u, out_f


def _reference(u, f, w1_u, w2_u, w1_f, w2_f):
    """Pure-JAX f32 reference mirroring the PyTorch forward."""
    def one(x, w1, w2):
        y = jnp.maximum(x @ w1, 0.0) @ w2 + x
        mean = y.mean(axis=(1, 2), keepdims=True)
        var = y.var(axis=(1, 2), keepdims=True, ddof=1)     # torch unbiased var
        return (y - mean) / jnp.sqrt(var + 1e-5)
    return one(u, w1_u, w2_u), one(f, w1_f, w2_f)


if __name__ == "__main__":
    # Shapes consistent with the module: embed_dim=32, feed_forward_hidden=64.
    B, N, E, H = 2, 8, 32, 64

    key = jax.random.PRNGKey(0)
    k_u, k_f, k1u, k2u, k1f, k2f = jax.random.split(key, 6)

    u = jax.random.normal(k_u, (B, N, E), dtype=jnp.float32)
    f = jax.random.normal(k_f, (B, N, E), dtype=jnp.float32)

    # Deterministic nn.Linear-style uniform init, stored as [in, out].
    def init_w(k, fan_in, shape):
        bound = 1.0 / jnp.sqrt(fan_in)
        return jax.random.uniform(k, shape, jnp.float32, -bound, bound)

    w1_u = init_w(k1u, E, (E, H))   # Linear(E -> H), transposed
    w2_u = init_w(k2u, H, (H, E))   # Linear(H -> E), transposed
    w1_f = init_w(k1f, E, (E, H))
    w2_f = init_w(k2f, H, (H, E))

    ref_u, ref_f = _reference(u, f, w1_u, w2_u, w1_f, w2_f)

    # 1) Optimized path: bf16 MXU operands, f32 residual + stats, grid over batches.
    out_u, out_f = ff_and_norm_sublayer(u, f, w1_u, w2_u, w1_f, w2_f)
    jax.block_until_ready((out_u, out_f))
    assert jnp.allclose(out_u, ref_u, atol=1e-1, rtol=1e-1), "bf16 path mismatch (u)"
    assert jnp.allclose(out_f, ref_f, atol=1e-1, rtol=1e-1), "bf16 path mismatch (f)"

    # 2) Full-f32 path: tight check against the PyTorch-equivalent reference.
    out_u32, out_f32 = ff_and_norm_sublayer(
        u, f, w1_u, w2_u, w1_f, w2_f, compute_dtype=jnp.float32)
    jax.block_until_ready((out_u32, out_f32))
    assert jnp.allclose(out_u32, ref_u, atol=1e-3, rtol=1e-3), "f32 path mismatch (u)"
    assert jnp.allclose(out_f32, ref_f, atol=1e-3, rtol=1e-3), "f32 path mismatch (f)"

    # 3) Multi-group-per-block path (production-style row tiling knob), f32, tight check.
    out_u2, out_f2 = ff_and_norm_sublayer(
        u, f, w1_u, w2_u, w1_f, w2_f,
        compute_dtype=jnp.float32, batches_per_block=2)
    jax.block_until_ready((out_u2, out_f2))
    assert jnp.allclose(out_u2, ref_u, atol=1e-3, rtol=1e-3), "BB=2 path mismatch (u)"
    assert jnp.allclose(out_f2, ref_f, atol=1e-3, rtol=1e-3), "BB=2 path mismatch (f)"

    print("KERNEL_OK")
</pallas_src>

<mosaic_0001>
module attributes {stable_mosaic.version = 11 : i64} {
  func.func @_ff_norm_kernel(%arg0: i32, %arg1: memref<1x8x32xf32, #tpu.memory_space<vmem>>, %arg2: memref<1x8x32xf32, #tpu.memory_space<vmem>>, %arg3: memref<32x64xbf16, #tpu.memory_space<vmem>>, %arg4: memref<64x32xbf16, #tpu.memory_space<vmem>>, %arg5: memref<32x64xbf16, #tpu.memory_space<vmem>>, %arg6: memref<64x32xbf16, #tpu.memory_space<vmem>>, %arg7: memref<1x8x32xf32, #tpu.memory_space<vmem>>, %arg8: memref<1x8x32xf32, #tpu.memory_space<vmem>>) attributes {dimension_semantics = [#tpu.dimension_semantics<parallel>], iteration_bounds = array<i64: 2>, scalar_prefetch = 0 : i64, scratch_operands = 0 : i64, tpu.core_type = #tpu.core_type<tc>, window_params = [{transform_indices = @transform_0, window_bounds = array<i64: 1, 8, 32>}, {transform_indices = @transform_1, window_bounds = array<i64: 1, 8, 32>}, {pipeline_mode = #tpu.pipeline_mode<synchronous>, transform_indices = @transform_2, window_bounds = array<i64: 32, 64>}, {pipeline_mode = #tpu.pipeline_mode<synchronous>, transform_indices = @transform_3, window_bounds = array<i64: 64, 32>}, {pipeline_mode = #tpu.pipeline_mode<synchronous>, transform_indices = @transform_4, window_bounds = array<i64: 32, 64>}, {pipeline_mode = #tpu.pipeline_mode<synchronous>, transform_indices = @transform_5, window_bounds = array<i64: 64, 32>}, {transform_indices = @transform_6, window_bounds = array<i64: 1, 8, 32>}, {transform_indices = @transform_7, window_bounds = array<i64: 1, 8, 32>}]} {
    %c0 = arith.constant 0 : index
    %c0_0 = arith.constant 0 : index
    %c0_1 = arith.constant 0 : index
    %0 = vector.load %arg1[%c0, %c0_0, %c0_1] : memref<1x8x32xf32, #tpu.memory_space<vmem>>, vector<1x8x32xf32>
    %1 = vector.shape_cast %0 : vector<1x8x32xf32> to vector<8x32xf32>
    %2 = arith.truncf %1 : vector<8x32xf32> to vector<8x32xbf16>
    %c0_2 = arith.constant 0 : index
    %c0_3 = arith.constant 0 : index
    %3 = vector.load %arg3[%c0_2, %c0_3] : memref<32x64xbf16, #tpu.memory_space<vmem>>, vector<32x64xbf16>
    %cst = arith.constant dense<0.000000e+00> : vector<8x64xf32>
    %4 = tpu.matmul %2, %3, %cst {dimension_numbers = #tpu.dot_dimension_numbers<[1], [0], [0], [1], [0, 0, 1, 1], [], []>} : vector<8x32xbf16>, vector<32x64xbf16>, vector<8x64xf32> -> vector<8x64xf32>
    %cst_4 = arith.constant 0.000000e+00 : f32
    %5 = vector.broadcast %cst_4 : f32 to vector<8x64xf32>
    %6 = arith.maximumf %4, %5 : vector<8x64xf32>
    %7 = arith.truncf %6 : vector<8x64xf32> to vector<8x64xbf16>
    %c0_5 = arith.constant 0 : index
    %c0_6 = arith.constant 0 : index
    %8 = vector.load %arg4[%c0_5, %c0_6] : memref<64x32xbf16, #tpu.memory_space<vmem>>, vector<64x32xbf16>
    %cst_7 = arith.constant dense<0.000000e+00> : vector<8x32xf32>
    %9 = tpu.matmul %7, %8, %cst_7 {dimension_numbers = #tpu.dot_dimension_numbers<[1], [0], [0], [1], [0, 0, 1, 1], [], []>} : vector<8x64xbf16>, vector<64x32xbf16>, vector<8x32xf32> -> vector<8x32xf32>
    %10 = arith.addf %9, %1 : vector<8x32xf32>
    %11 = vector.shape_cast %10 : vector<8x32xf32> to vector<1x8x32xf32>
    %cst_8 = arith.constant dense<0.000000e+00> : vector<1x8xf32>
    %12 = vector.multi_reduction <add>, %11, %cst_8 [2] : vector<1x8x32xf32> to vector<1x8xf32>
    %13 = vector.shape_cast %12 : vector<1x8xf32> to vector<1x8x1xf32>
    %cst_9 = arith.constant dense<0.000000e+00> : vector<1x1xf32>
    %14 = vector.multi_reduction <add>, %13, %cst_9 [1] : vector<1x8x1xf32> to vector<1x1xf32>
    %15 = vector.shape_cast %14 : vector<1x1xf32> to vector<1x1x1xf32>
    %cst_10 = arith.constant 3.906250e-03 : f32
    %16 = vector.broadcast %cst_10 : f32 to vector<1x1x1xf32>
    %17 = arith.mulf %15, %16 : vector<1x1x1xf32>
    %18 = vector.broadcast %17 : vector<1x1x1xf32> to vector<1x8x32xf32>
    %19 = arith.subf %11, %18 : vector<1x8x32xf32>
    %20 = arith.mulf %19, %19 : vector<1x8x32xf32>
    %cst_11 = arith.constant dense<0.000000e+00> : vector<1x8xf32>
    %21 = vector.multi_reduction <add>, %20, %cst_11 [2] : vector<1x8x32xf32> to vector<1x8xf32>
    %22 = vector.shape_cast %21 : vector<1x8xf32> to vector<1x8x1xf32>
    %cst_12 = arith.constant dense<0.000000e+00> : vector<1x1xf32>
    %23 = vector.multi_reduction <add>, %22, %cst_12 [1] : vector<1x8x1xf32> to vector<1x1xf32>
    %24 = vector.shape_cast %23 : vector<1x1xf32> to vector<1x1x1xf32>
    %cst_13 = arith.constant 0.00392156886 : f32
    %25 = vector.broadcast %cst_13 : f32 to vector<1x1x1xf32>
    %26 = arith.mulf %24, %25 : vector<1x1x1xf32>
    %cst_14 = arith.constant 9.99999974E-6 : f32
    %27 = vector.broadcast %cst_14 : f32 to vector<1x1x1xf32>
    %28 = arith.addf %26, %27 : vector<1x1x1xf32>
    %29 = math.rsqrt %28 : vector<1x1x1xf32>
    %30 = vector.broadcast %29 : vector<1x1x1xf32> to vector<1x8x32xf32>
    %31 = arith.mulf %19, %30 : vector<1x8x32xf32>
    %c0_15 = arith.constant 0 : index
    %c0_16 = arith.constant 0 : index
    %c0_17 = arith.constant 0 : index
    %32 = vector.load %arg7[%c0_15, %c0_16, %c0_17] : memref<1x8x32xf32, #tpu.memory_space<vmem>>, vector<1x8x32xf32>
    tpu.vector_store %arg7[%c0_15, %c0_16, %c0_17], %31 {strides = array<i32>} : memref<1x8x32xf32, #tpu.memory_space<vmem>>, vector<1x8x32xf32>,
    %c0_18 = arith.constant 0 : index
    %c0_19 = arith.constant 0 : index
    %c0_20 = arith.constant 0 : index
    %33 = vector.load %arg2[%c0_18, %c0_19, %c0_20] : memref<1x8x32xf32, #tpu.memory_space<vmem>>, vector<1x8x32xf32>
    %34 = vector.shape_cast %33 : vector<1x8x32xf32> to vector<8x32xf32>
    %35 = arith.truncf %34 : vector<8x32xf32> to vector<8x32xbf16>
    %c0_21 = arith.constant 0 : index
    %c0_22 = arith.constant 0 : index
    %36 = vector.load %arg5[%c0_21, %c0_22] : memref<32x64xbf16, #tpu.memory_space<vmem>>, vector<32x64xbf16>
    %cst_23 = arith.constant dense<0.000000e+00> : vector<8x64xf32>
    %37 = tpu.matmul %35, %36, %cst_23 {dimension_numbers = #tpu.dot_dimension_numbers<[1], [0], [0], [1], [0, 0, 1, 1], [], []>} : vector<8x32xbf16>, vector<32x64xbf16>, vector<8x64xf32> -> vector<8x64xf32>
    %cst_24 = arith.constant 0.000000e+00 : f32
    %38 = vector.broadcast %cst_24 : f32 to vector<8x64xf32>
    %39 = arith.maximumf %37, %38 : vector<8x64xf32>
    %40 = arith.truncf %39 : vector<8x64xf32> to vector<8x64xbf16>
    %c0_25 = arith.constant 0 : index
    %c0_26 = arith.constant 0 : index
    %41 = vector.load %arg6[%c0_25, %c0_26] : memref<64x32xbf16, #tpu.memory_space<vmem>>, vector<64x32xbf16>
    %cst_27 = arith.constant dense<0.000000e+00> : vector<8x32xf32>
    %42 = tpu.matmul %40, %41, %cst_27 {dimension_numbers = #tpu.dot_dimension_numbers<[1], [0], [0], [1], [0, 0, 1, 1], [], []>} : vector<8x64xbf16>, vector<64x32xbf16>, vector<8x32xf32> -> vector<8x32xf32>
    %43 = arith.addf %42, %34 : vector<8x32xf32>
    %44 = vector.shape_cast %43 : vector<8x32xf32> to vector<1x8x32xf32>
    %cst_28 = arith.constant dense<0.000000e+00> : vector<1x8xf32>
    %45 = vector.multi_reduction <add>, %44, %cst_28 [2] : vector<1x8x32xf32> to vector<1x8xf32>
    %46 = vector.shape_cast %45 : vector<1x8xf32> to vector<1x8x1xf32>
    %cst_29 = arith.constant dense<0.000000e+00> : vector<1x1xf32>
    %47 = vector.multi_reduction <add>, %46, %cst_29 [1] : vector<1x8x1xf32> to vector<1x1xf32>
    %48 = vector.shape_cast %47 : vector<1x1xf32> to vector<1x1x1xf32>
    %cst_30 = arith.constant 3.906250e-03 : f32
    %49 = vector.broadcast %cst_30 : f32 to vector<1x1x1xf32>
    %50 = arith.mulf %48, %49 : vector<1x1x1xf32>
    %51 = vector.broadcast %50 : vector<1x1x1xf32> to vector<1x8x32xf32>
    %52 = arith.subf %44, %51 : vector<1x8x32xf32>
    %53 = arith.mulf %52, %52 : vector<1x8x32xf32>
    %cst_31 = arith.constant dense<0.000000e+00> : vector<1x8xf32>
    %54 = vector.multi_reduction <add>, %53, %cst_31 [2] : vector<1x8x32xf32> to vector<1x8xf32>
    %55 = vector.shape_cast %54 : vector<1x8xf32> to vector<1x8x1xf32>
    %cst_32 = arith.constant dense<0.000000e+00> : vector<1x1xf32>
    %56 = vector.multi_reduction <add>, %55, %cst_32 [1] : vector<1x8x1xf32> to vector<1x1xf32>
    %57 = vector.shape_cast %56 : vector<1x1xf32> to vector<1x1x1xf32>
    %cst_33 = arith.constant 0.00392156886 : f32
    %58 = vector.broadcast %cst_33 : f32 to vector<1x1x1xf32>
    %59 = arith.mulf %57, %58 : vector<1x1x1xf32>
    %cst_34 = arith.constant 9.99999974E-6 : f32
    %60 = vector.broadcast %cst_34 : f32 to vector<1x1x1xf32>
    %61 = arith.addf %59, %60 : vector<1x1x1xf32>
    %62 = math.rsqrt %61 : vector<1x1x1xf32>
    %63 = vector.broadcast %62 : vector<1x1x1xf32> to vector<1x8x32xf32>
    %64 = arith.mulf %52, %63 : vector<1x8x32xf32>
    %c0_35 = arith.constant 0 : index
    %c0_36 = arith.constant 0 : index
    %c0_37 = arith.constant 0 : index
    %65 = vector.load %arg8[%c0_35, %c0_36, %c0_37] : memref<1x8x32xf32, #tpu.memory_space<vmem>>, vector<1x8x32xf32>
    tpu.vector_store %arg8[%c0_35, %c0_36, %c0_37], %64 {strides = array<i32>} : memref<1x8x32xf32, #tpu.memory_space<vmem>>, vector<1x8x32xf32>,
    return
  }
  func.func @transform_0(%arg0: i32) -> (i32, i32, i32) {
    %c0_i32 = arith.constant 0 : i32
    %c0_i32_0 = arith.constant 0 : i32
    %c0_i32_1 = arith.constant 0 : i32
    return %arg0, %c0_i32, %c0_i32_0 : i32, i32, i32
  }
  func.func @transform_1(%arg0: i32) -> (i32, i32, i32) {
    %c0_i32 = arith.constant 0 : i32
    %c0_i32_0 = arith.constant 0 : i32
    %c0_i32_1 = arith.constant 0 : i32
    return %arg0, %c0_i32, %c0_i32_0 : i32, i32, i32
  }
  func.func @transform_2(%arg0: i32) -> (i32, i32) {
    %c0_i32 = arith.constant 0 : i32
    %c0_i32_0 = arith.constant 0 : i32
    %c0_i32_1 = arith.constant 0 : i32
    return %c0_i32, %c0_i32_0 : i32, i32
  }
  func.func @transform_3(%arg0: i32) -> (i32, i32) {
    %c0_i32 = arith.constant 0 : i32
    %c0_i32_0 = arith.constant 0 : i32
    %c0_i32_1 = arith.constant 0 : i32
    return %c0_i32, %c0_i32_0 : i32, i32
  }
  func.func @transform_4(%arg0: i32) -> (i32, i32) {
    %c0_i32 = arith.constant 0 : i32
    %c0_i32_0 = arith.constant 0 : i32
    %c0_i32_1 = arith.constant 0 : i32
    return %c0_i32, %c0_i32_0 : i32, i32
  }
  func.func @transform_5(%arg0: i32) -> (i32, i32) {
    %c0_i32 = arith.constant 0 : i32
    %c0_i32_0 = arith.constant 0 : i32
    %c0_i32_1 = arith.constant 0 : i32
    return %c0_i32, %c0_i32_0 : i32, i32
  }
  func.func @transform_6(%arg0: i32) -> (i32, i32, i32) {
    %c0_i32 = arith.constant 0 : i32
    %c0_i32_0 = arith.constant 0 : i32
    %c0_i32_1 = arith.constant 0 : i32
    return %arg0, %c0_i32, %c0_i32_0 : i32, i32, i32
  }
  func.func @transform_7(%arg0: i32) -> (i32, i32, i32) {
    %c0_i32 = arith.constant 0 : i32
    %c0_i32_0 = arith.constant 0 : i32
    %c0_i32_1 = arith.constant 0 : i32
    return %arg0, %c0_i32, %c0_i32_0 : i32, i32, i32
  }
}

</mosaic_0001>

<llo_original>
// kernel: tpu_custom_call.1
$region0: #{tpu_custom_call.1}
  #allocation0 [shape = 'u32[]', space=smem, size = 0x4, offset = 0x4, fixed_abs, tag = 'smem constant byte address 0x4 - core index']
  #allocation1 [shape = 'u32[144,128]{1,0:T(1,128)}', space=vmem, size = 0x12000, scoped, tag = 'internal scratch']
  %s0 = inlined_call_operand.vmem [shape: f32[2,8,32], index: 0, kind: input, shape index: {}]
  %s1 = inlined_call_operand.vmem [shape: f32[2,8,32], index: 1, kind: input, shape index: {}]
  %s2 = inlined_call_operand.vmem [shape: bf16[32,64], index: 2, kind: input, shape index: {}]
  %s3 = inlined_call_operand.vmem [shape: bf16[64,32], index: 3, kind: input, shape index: {}]
  %s4 = inlined_call_operand.vmem [shape: bf16[32,64], index: 4, kind: input, shape index: {}]
  %s5 = inlined_call_operand.vmem [shape: bf16[64,32], index: 5, kind: input, shape index: {}]
  %s6 = inlined_call_operand.hbm [shape: f32[2,8,32], index: 6, kind: output, shape index: {0}]
  %s7 = inlined_call_operand.hbm [shape: f32[2,8,32], index: 7, kind: output, shape index: {1}]
  %8 = xla_tuple %s6, %s7
  %s9 = sld [smem:[#allocation0]]
  $region65: #{tpu_custom_call.1} parent=0
    _
  %s11 = ssub.s32 1, %s9
  %s12 = scalar_select 0, %s11, %s9
  $region1: #{tpu_custom_call.1} parent=0
    #allocation2 [shape = 'u8[8192]{0}', space=vmem, size = 0x2000, scoped, tag = 'output window, operand 0']
    #allocation3 [shape = 's32[2]{0}', space=sflag, size = 0x8, scoped, tag = 'scoped memory for tpu_custom_call.1']
    #allocation4 [shape = 'u8[8192]{0}', space=vmem, size = 0x2000, scoped, tag = 'output window, operand 1']
    #allocation5 [shape = 's32[2]{0}', space=sflag, size = 0x8, scoped, tag = 'scoped memory for tpu_custom_call.1']
    %13 = vsyncpa [#allocation3], 0
    %s14 = scalar_lea.sflag [#allocation3], 1
    %15 = vsyncpa %s14, 0
    %16 = vsyncpa [#allocation5], 0
    %s17 = scalar_lea.sflag [#allocation5], 1
    %18 = vsyncpa %s17, 0
    loop: start=0, step=1, limit=4
    $region2: #{tpu_custom_call.1} parent=1 // loop_pre_header
      _
    $region3: #{tpu_custom_call.1} parent=1 // loop_header
      %s20 = sphi 0, %s24
      %p21 = scmp.ge.s32.totalorder %s20, 4
      %s30 = sphi 0, %s32
      %s33 = sphi 0, %s30
      %s34 = sphi 0, %s33
      %s50 = sphi 0, %s34
      %s56 = sphi 0, %s58
      %s59 = sphi 0, %s56
      %s60 = sphi 0, %s59
      %s76 = sphi 0, %s60
      %s80 = sphi 0, %s80
      %s82 = sphi 0, %s80
      %s83 = sphi 0, %s82
      %s97 = sphi 0, %s83
      %s101 = sphi 0, %s101
      %s103 = sphi 0, %s101
      %s104 = sphi 0, %s103
      %s118 = sphi 0, %s104
      %s122 = sphi 0, %s122
      %s124 = sphi 0, %s122
      %s125 = sphi 0, %s124
      %s139 = sphi 0, %s125
      %s143 = sphi 0, %s143
      %s145 = sphi 0, %s143
      %s146 = sphi 0, %s145
      %s160 = sphi 0, %s146
      %s166 = sphi 0, %s168
      %s169 = sphi 0, %s166
      %s170 = sphi 0, %s169
      %s186 = sphi 0, %s170
      %s192 = sphi 0, %s194
      %s195 = sphi 0, %s192
      %s196 = sphi 0, %s195
      %s212 = sphi 0, %s196
    $region4: #{tpu_custom_call.1} parent=1 // loop_header_branch
      %23 = sbr.rel (%p21) target = $region8
    $region5: #{tpu_custom_call.1} parent=1 // loop_body
      %s25 = ssub.s32 %s20, 1
      %s26 = ssub.s32 %s20, 2
      %s27 = sadd.s32 %s20, 1
      %s28 = ssub.s32 %s20, %s27
      %p29 = scmp.eq.s32.totalorder %s28, 0
      %s31 = sadd.s32 %s30, 1
      %s32 = scalar_select %p29, %s30, %s31
      %p35 = pneg %p29
      %p36 = scmp.eq.s32.totalorder %s20, 1
      %p37 = por %p35, %p36
      %p38 = scmp.ne.s32.totalorder %s30, %s33
      %p39 = scmp.eq.s32.totalorder %s20, 0
      %p40 = por %p38, %p39
      %p41 = scmp.ne.s32.totalorder %s30, %s33
      %p42 = scmp.eq.s32.totalorder %s25, 1
      %p43 = por %p41, %p42
      %p44 = scmp.ne.s32.totalorder %s33, %s34
      %p45 = scmp.eq.s32.totalorder %s25, 0
      %p46 = por %p44, %p45
      %p47 = scmp.ne.s32.totalorder %s33, %s34
      %p48 = scmp.eq.s32.totalorder %s26, 1
      %p49 = por %p47, %p48
      %p51 = scmp.ne.s32.totalorder %s34, %s50
      %p52 = scmp.eq.s32.totalorder %s26, 0
      %p53 = por %p51, %p52
      %s54 = ssub.s32 %s20, %s27
      %p55 = scmp.eq.s32.totalorder %s54, 0
      %s57 = sadd.s32 %s56, 1
      %s58 = scalar_select %p55, %s56, %s57
      %p61 = pneg %p55
      %p62 = scmp.eq.s32.totalorder %s20, 1
      %p63 = por %p61, %p62
      %p64 = scmp.ne.s32.totalorder %s56, %s59
      %p65 = scmp.eq.s32.totalorder %s20, 0
      %p66 = por %p64, %p65
      %p67 = scmp.ne.s32.totalorder %s56, %s59
      %p68 = scmp.eq.s32.totalorder %s25, 1
      %p69 = por %p67, %p68
      %p70 = scmp.ne.s32.totalorder %s59, %s60
      %p71 = scmp.eq.s32.totalorder %s25, 0
      %p72 = por %p70, %p71
      %p73 = scmp.ne.s32.totalorder %s59, %s60
      %p74 = scmp.eq.s32.totalorder %s26, 1
      %p75 = por %p73, %p74
      %p77 = scmp.ne.s32.totalorder %s60, %s76
      %p78 = scmp.eq.s32.totalorder %s26, 0
      %p79 = por %p77, %p78
      %s81 = sadd.s32 %s80, 1
      %p84 = scmp.eq.s32.totalorder %s20, 1
      %p85 = scmp.ne.s32.totalorder %s80, %s82
      %p86 = scmp.eq.s32.totalorder %s20, 0
      %p87 = por %p85, %p86
      %p88 = scmp.ne.s32.totalorder %s80, %s82
      %p89 = scmp.eq.s32.totalorder %s25, 1
      %p90 = por %p88, %p89
      %p91 = scmp.ne.s32.totalorder %s82, %s83
      %p92 = scmp.eq.s32.totalorder %s25, 0
      %p93 = por %p91, %p92
      %p94 = scmp.ne.s32.totalorder %s82, %s83
      %p95 = scmp.eq.s32.totalorder %s26, 1
      %p96 = por %p94, %p95
      %p98 = scmp.ne.s32.totalorder %s83, %s97
      %p99 = scmp.eq.s32.totalorder %s26, 0
      %p100 = por %p98, %p99
      %s102 = sadd.s32 %s101, 1
      %p105 = scmp.eq.s32.totalorder %s20, 1
      %p106 = scmp.ne.s32.totalorder %s101, %s103
      %p107 = scmp.eq.s32.totalorder %s20, 0
      %p108 = por %p106, %p107
      %p109 = scmp.ne.s32.totalorder %s101, %s103
      %p110 = scmp.eq.s32.totalorder %s25, 1
      %p111 = por %p109, %p110
      %p112 = scmp.ne.s32.totalorder %s103, %s104
      %p113 = scmp.eq.s32.totalorder %s25, 0
      %p114 = por %p112, %p113
      %p115 = scmp.ne.s32.totalorder %s103, %s104
      %p116 = scmp.eq.s32.totalorder %s26, 1
      %p117 = por %p115, %p116
      %p119 = scmp.ne.s32.totalorder %s104, %s118
      %p120 = scmp.eq.s32.totalorder %s26, 0
      %p121 = por %p119, %p120
      %s123 = sadd.s32 %s122, 1
      %p126 = scmp.eq.s32.totalorder %s20, 1
      %p127 = scmp.ne.s32.totalorder %s122, %s124
      %p128 = scmp.eq.s32.totalorder %s20, 0
      %p129 = por %p127, %p128
      %p130 = scmp.ne.s32.totalorder %s122, %s124
      %p131 = scmp.eq.s32.totalorder %s25, 1
      %p132 = por %p130, %p131
      %p133 = scmp.ne.s32.totalorder %s124, %s125
      %p134 = scmp.eq.s32.totalorder %s25, 0
      %p135 = por %p133, %p134
      %p136 = scmp.ne.s32.totalorder %s124, %s125
      %p137 = scmp.eq.s32.totalorder %s26, 1
      %p138 = por %p136, %p137
      %p140 = scmp.ne.s32.totalorder %s125, %s139
      %p141 = scmp.eq.s32.totalorder %s26, 0
      %p142 = por %p140, %p141
      %s144 = sadd.s32 %s143, 1
      %p147 = scmp.eq.s32.totalorder %s20, 1
      %p148 = scmp.ne.s32.totalorder %s143, %s145
      %p149 = scmp.eq.s32.totalorder %s20, 0
      %p150 = por %p148, %p149
      %p151 = scmp.ne.s32.totalorder %s143, %s145
      %p152 = scmp.eq.s32.totalorder %s25, 1
      %p153 = por %p151, %p152
      %p154 = scmp.ne.s32.totalorder %s145, %s146
      %p155 = scmp.eq.s32.totalorder %s25, 0
      %p156 = por %p154, %p155
      %p157 = scmp.ne.s32.totalorder %s145, %s146
      %p158 = scmp.eq.s32.totalorder %s26, 1
      %p159 = por %p157, %p158
      %p161 = scmp.ne.s32.totalorder %s146, %s160
      %p162 = scmp.eq.s32.totalorder %s26, 0
      %p163 = por %p161, %p162
      %s164 = ssub.s32 %s20, %s27
      %p165 = scmp.eq.s32.totalorder %s164, 0
      %s167 = sadd.s32 %s166, 1
      %s168 = scalar_select %p165, %s166, %s167
      %p171 = pneg %p165
      %p172 = scmp.eq.s32.totalorder %s20, 1
      %p173 = por %p171, %p172
      %p174 = scmp.ne.s32.totalorder %s166, %s169
      %p175 = scmp.eq.s32.totalorder %s20, 0
      %p176 = por %p174, %p175
      %p177 = scmp.ne.s32.totalorder %s166, %s169
      %p178 = scmp.eq.s32.totalorder %s25, 1
      %p179 = por %p177, %p178
      %p180 = scmp.ne.s32.totalorder %s169, %s170
      %p181 = scmp.eq.s32.totalorder %s25, 0
      %p182 = por %p180, %p181
      %p183 = scmp.ne.s32.totalorder %s169, %s170
      %p184 = scmp.eq.s32.totalorder %s26, 1
      %p185 = por %p183, %p184
      %p187 = scmp.ne.s32.totalorder %s170, %s186
      %p188 = scmp.eq.s32.totalorder %s26, 0
      %p189 = por %p187, %p188
      %s190 = ssub.s32 %s20, %s27
      %p191 = scmp.eq.s32.totalorder %s190, 0
      %s193 = sadd.s32 %s192, 1
      %s194 = scalar_select %p191, %s192, %s193
      %p197 = pneg %p191
      %p198 = scmp.eq.s32.totalorder %s20, 1
      %p199 = por %p197, %p198
      %p200 = scmp.ne.s32.totalorder %s192, %s195
      %p201 = scmp.eq.s32.totalorder %s20, 0
      %p202 = por %p200, %p201
      %p203 = scmp.ne.s32.totalorder %s192, %s195
      %p204 = scmp.eq.s32.totalorder %s25, 1
      %p205 = por %p203, %p204
      %p206 = scmp.ne.s32.totalorder %s195, %s196
      %p207 = scmp.eq.s32.totalorder %s25, 0
      %p208 = por %p206, %p207
      %p209 = scmp.ne.s32.totalorder %s195, %s196
      %p210 = scmp.eq.s32.totalorder %s26, 1
      %p211 = por %p209, %p210
      %p213 = scmp.ne.s32.totalorder %s196, %s212
      %p214 = scmp.eq.s32.totalorder %s26, 0
      %p215 = por %p213, %p214
      %p216 = scmp.le.s32.totalorder 1, %s20
      %p217 = scmp.lt.s32.totalorder %s20, 3
      %p218 = pnand %p216, %p217
      %p219 = pneg %p218
      // Predicated region
      $region9: #{tpu_custom_call.1} parent=5 // pred_check
        _
      $region10: #{tpu_custom_call.1} parent=5 // pred_check_branch
        %221 = sbr.rel (%p218) target = $region12
      $region11: #{tpu_custom_call.1} parent=5 // pred_region
        %s222 = ssub.s32 %s20, 1
        // Predicated region
        $region13: #{tpu_custom_call.1} parent=11 // pred_check
          %p223 = pneg %p93
        $region14: #{tpu_custom_call.1} parent=11 // pred_check_branch
          %225 = sbr.rel (%p223) target = $region16
        $region15: #{tpu_custom_call.1} parent=11 // pred_region
          _
        $region16: #{tpu_custom_call.1} parent=11 // pred_fallthru
          _
        // Predicated region
        $region17: #{tpu_custom_call.1} parent=11 // pred_check
          %p226 = pneg %p114
        $region18: #{tpu_custom_call.1} parent=11 // pred_check_branch
          %228 = sbr.rel (%p226) target = $region20
        $region19: #{tpu_custom_call.1} parent=11 // pred_region
          _
        $region20: #{tpu_custom_call.1} parent=11 // pred_fallthru
          _
        // Predicated region
        $region21: #{tpu_custom_call.1} parent=11 // pred_check
          %p229 = pneg %p135
        $region22: #{tpu_custom_call.1} parent=11 // pred_check_branch
          %231 = sbr.rel (%p229) target = $region24
        $region23: #{tpu_custom_call.1} parent=11 // pred_region
          _
        $region24: #{tpu_custom_call.1} parent=11 // pred_fallthru
          _
        // Predicated region
        $region25: #{tpu_custom_call.1} parent=11 // pred_check
          %p232 = pneg %p156
        $region26: #{tpu_custom_call.1} parent=11 // pred_check_branch
          %234 = sbr.rel (%p232) target = $region28
        $region27: #{tpu_custom_call.1} parent=11 // pred_region
          _
        $region28: #{tpu_custom_call.1} parent=11 // pred_fallthru
          _
      $region12: #{tpu_custom_call.1} parent=5 // pred_fallthru
        _
      %p235 = scmp.lt.s32.totalorder %s20, 2
      // Predicated region
      $region29: #{tpu_custom_call.1} parent=5 // pred_check
        %p236 = pneg %p235
      $region30: #{tpu_custom_call.1} parent=5 // pred_check_branch
        %238 = sbr.rel (%p236) target = $region32
      $region31: #{tpu_custom_call.1} parent=5 // pred_region
        // Predicated region
        $region33: #{tpu_custom_call.1} parent=31 // pred_check
          %p239 = pneg %p40
        $region34: #{tpu_custom_call.1} parent=31 // pred_check_branch
          %241 = sbr.rel (%p239) target = $region36
        $region35: #{tpu_custom_call.1} parent=31 // pred_region
          %p242 = scmp.lt.s32.totalorder %s20, 1
          %s243 = scalar_select %p242, %s20, 1
          %s244 = smul.addr %s243, 8
          %s245 = scalar_lea.vmem %s0, %s244
        $region36: #{tpu_custom_call.1} parent=31 // pred_fallthru
          _
        // Predicated region
        $region37: #{tpu_custom_call.1} parent=31 // pred_check
          %p246 = pneg %p66
        $region38: #{tpu_custom_call.1} parent=31 // pred_check_branch
          %248 = sbr.rel (%p246) target = $region40
        $region39: #{tpu_custom_call.1} parent=31 // pred_region
          %p249 = scmp.lt.s32.totalorder %s20, 1
          %s250 = scalar_select %p249, %s20, 1
          %s251 = smul.addr %s250, 8
          %s252 = scalar_lea.vmem %s1, %s251
        $region40: #{tpu_custom_call.1} parent=31 // pred_fallthru
          _
      $region32: #{tpu_custom_call.1} parent=5 // pred_fallthru
        _
      %p253 = scmp.le.s32.totalorder 1, %s20
      %p254 = scmp.lt.s32.totalorder %s20, 3
      %p255 = pnand %p253, %p254
      %p256 = pneg %p255
      // Predicated region
      $region41: #{tpu_custom_call.1} parent=5 // pred_check
        _
      $region42: #{tpu_custom_call.1} parent=5 // pred_check_branch
        %258 = sbr.rel (%p255) target = $region44
      $region43: #{tpu_custom_call.1} parent=5 // pred_region
        %s259 = ssub.s32 %s20, 1
        %p260 = scmp.lt.s32.totalorder %s25, 1
        %s261 = scalar_select %p260, %s25, 1
        %s262 = smul.addr %s261, 8
        %s263 = scalar_lea.vmem %s0, %s262
        %p264 = pneg %p46
        %p265 = pneg %p43
        %p266 = scmp.lt.s32.totalorder %s25, 1
        %s267 = scalar_select %p266, %s25, 1
        %s268 = smul.addr %s267, 8
        %s269 = scalar_lea.vmem %s1, %s268
        %p270 = pneg %p72
        %p271 = pneg %p69
        %p272 = pneg %p93
        %p273 = pneg %p90
        %p274 = pneg %p114
        %p275 = pneg %p111
        %p276 = pneg %p135
        %p277 = pneg %p132
        %p278 = pneg %p156
        %p279 = pneg %p153
        %p280 = pneg %p182
        %p281 = pneg %p179
        %s282 = sand.u32 %s169, 1
        %s283 = scalar_lea.sflag [#allocation3], %s282
        %s284 = sand.u32 %s169, 1
        %s285 = smul.addr %s284, 8
        %s286 = scalar_lea.vmem [#allocation2], %s285
        %p287 = pneg %p208
        %p288 = pneg %p205
        %s289 = sand.u32 %s195, 1
        %s290 = scalar_lea.sflag [#allocation5], %s289
        %s291 = sand.u32 %s195, 1
        %s292 = smul.addr %s291, 8
        %s293 = scalar_lea.vmem [#allocation4], %s292
        %p294 = scmp.lt.s32.totalorder %s25, 1
        %s295 = scalar_select %p294, %s25, 1
        %s296 = smul.addr %s295, 8
        %s297 = scalar_lea.vmem %s0, %s296
        %p298 = scmp.lt.s32.totalorder %s25, 1
        %s299 = scalar_select %p298, %s25, 1
        %s300 = smul.addr %s299, 8
        %s301 = scalar_lea.vmem %s1, %s300
        %v303 = vld [vmem:[%s297] sm:$0xff]
        %v304 = vpack.c.bf16 %v303, %v303
        %v305 = vld [vmem:[%s2] sm:$0xf]
        %v306 = vld [vmem:[%s2 + $0x4] sm:$0xf]
        %v307 = vld [vmem:[%s2 + $0x8] sm:$0xf]
        %v308 = vld [vmem:[%s2 + $0xc] sm:$0xf]
        %v313 = vunpack.c.l.b16 %v305
        %v314 = vunpack.c.l.b16 %v306
        %v315 = vunpack.c.l.b16 %v307
        %v316 = vunpack.c.l.b16 %v308
        %v317 = vpack.c.b16 %v314, %v313
        %v318 = vpack.c.b16 %v316, %v315
        %vm321 = vcmask 261120
        %v323 = vsel %vm321, %v304, 0
        %325 = vmatprep.subr.bf16.mxu0 0
        %326 = vmatpush1.bf16.msra.mxu0 %v317
        %327 = vmatprep.subr.bf16.mxu0 0
        %328 = vmatpush1.bf16.msra.mxu0 %v318
        %329 = vmatprep.subr.bf16.mxu0 0
        %330 = vmatpush1.bf16.msra.mxu0 0
        %331 = vmatprep.subr.bf16.mxu0 0
        %332 = vmatpush1.bf16.msra.mxu0 0
        %333 = vmatprep.subr.bf16.mxu0 0
        %334 = vmatpush1.bf16.msra.mxu0 0
        %335 = vmatprep.subr.bf16.mxu0 0
        %336 = vmatpush1.bf16.msra.mxu0 0
        %337 = vmatprep.subr.bf16.mxu0 0
        %338 = vmatpush1.bf16.msra.mxu0 0
        %339 = vmatprep.subr.bf16.mxu0 0
        %340 = vmatpush1.bf16.msra.mxu0 0
        %341 = vmatprep.subr.bf16.mxu0 0
        %342 = vmatpush1.bf16.msra.mxu0 0
        %343 = vmatprep.subr.bf16.mxu0 0
        %344 = vmatpush1.bf16.msra.mxu0 0
        %345 = vmatprep.subr.bf16.mxu0 0
        %346 = vmatpush1.bf16.msra.mxu0 0
        %347 = vmatprep.subr.bf16.mxu0 0
        %348 = vmatpush1.bf16.msra.mxu0 0
        %349 = vmatprep.subr.bf16.mxu0 0
        %350 = vmatpush1.bf16.msra.mxu0 0
        %351 = vmatprep.subr.bf16.mxu0 0
        %352 = vmatpush1.bf16.msra.mxu0 0
        %353 = vmatprep.subr.bf16.mxu0 0
        %354 = vmatpush1.bf16.msra.mxu0 0
        %355 = vmatprep.subr.bf16.mxu0 0
        %356 = vmatpush1.bf16.msra.mxu0 0
        %357 = vmatprep.mubr.bf16.mxu0 0
        %358 = vmatmul.mubr.bf16.gmra.mrb[0].mxu0 %v323
        %v359 = vpop.f32.mrb[0].mxu0
        %v360 = vadd.f32 0.0, %v359
        %v361 = vpop.f32.mrb[0].mxu0
        %v362 = vpop.f32.mrb[0].mxu0
        %v363 = vpop.f32.mrb[0].mxu0
        %364 = vdwg.mxu0
        %v365 = vmax.f32 %v360, 0.0
        %v366 = vpack.c.bf16 %v365, %v365
        %v367 = vld [vmem:[%s3] sm:$0xf]
        %v368 = vld [vmem:[%s3 + $0x4] sm:$0xf]
        %v369 = vld [vmem:[%s3 + $0x8] sm:$0xf]
        %v370 = vld [vmem:[%s3 + $0xc] sm:$0xf]
        %v371 = vld [vmem:[%s3 + $0x10] sm:$0xf]
        %v372 = vld [vmem:[%s3 + $0x14] sm:$0xf]
        %v373 = vld [vmem:[%s3 + $0x18] sm:$0xf]
        %v374 = vld [vmem:[%s3 + $0x1c] sm:$0xf]
        %v383 = vunpack.c.l.b16 %v367
        %v384 = vunpack.c.l.b16 %v368
        %v385 = vunpack.c.l.b16 %v369
        %v386 = vunpack.c.l.b16 %v370
        %v387 = vunpack.c.l.b16 %v371
        %v388 = vunpack.c.l.b16 %v372
        %v389 = vunpack.c.l.b16 %v373
        %v390 = vunpack.c.l.b16 %v374
        %v391 = vpack.c.b16 %v384, %v383
        %v392 = vpack.c.b16 %v386, %v385
        %v393 = vpack.c.b16 %v388, %v387
        %v394 = vpack.c.b16 %v390, %v389
        %vm399 = vcmask 523264
        %v401 = vsel %vm399, %v366, 0
        %403 = vmatprep.subr.bf16.mxu0 0
        %404 = vmatpush1.bf16.msra.mxu0 %v391
        %405 = vmatprep.subr.bf16.mxu0 0
        %406 = vmatpush1.bf16.msra.mxu0 %v392
        %407 = vmatprep.subr.bf16.mxu0 0
        %408 = vmatpush1.bf16.msra.mxu0 %v393
        %409 = vmatprep.subr.bf16.mxu0 0
        %410 = vmatpush1.bf16.msra.mxu0 %v394
        %411 = vmatprep.subr.bf16.mxu0 0
        %412 = vmatpush1.bf16.msra.mxu0 0
        %413 = vmatprep.subr.bf16.mxu0 0
        %414 = vmatpush1.bf16.msra.mxu0 0
        %415 = vmatprep.subr.bf16.mxu0 0
        %416 = vmatpush1.bf16.msra.mxu0 0
        %417 = vmatprep.subr.bf16.mxu0 0
        %418 = vmatpush1.bf16.msra.mxu0 0
        %419 = vmatprep.subr.bf16.mxu0 0
        %420 = vmatpush1.bf16.msra.mxu0 0
        %421 = vmatprep.subr.bf16.mxu0 0
        %422 = vmatpush1.bf16.msra.mxu0 0
        %423 = vmatprep.subr.bf16.mxu0 0
        %424 = vmatpush1.bf16.msra.mxu0 0
        %425 = vmatprep.subr.bf16.mxu0 0
        %426 = vmatpush1.bf16.msra.mxu0 0
        %427 = vmatprep.subr.bf16.mxu0 0
        %428 = vmatpush1.bf16.msra.mxu0 0
        %429 = vmatprep.subr.bf16.mxu0 0
        %430 = vmatpush1.bf16.msra.mxu0 0
        %431 = vmatprep.subr.bf16.mxu0 0
        %432 = vmatpush1.bf16.msra.mxu0 0
        %433 = vmatprep.subr.bf16.mxu0 0
        %434 = vmatpush1.bf16.msra.mxu0 0
        %435 = vmatprep.mubr.bf16.mxu0 0
        %436 = vmatmul.mubr.bf16.gmra.mrb[0].mxu0 %v401
        %v437 = vpop.f32.mrb[0].mxu0
        %v438 = vadd.f32 %v303, %v437
        %v439 = vpop.f32.mrb[0].mxu0
        %v440 = vpop.f32.mrb[0].mxu0
        %v441 = vpop.f32.mrb[0].mxu0
        %442 = vdwg.mxu0
        %v443 = vsel %vm321, %v438, 0.0
        %444 = vadd.xlane.f32.xlu0 %v443
        %v445 = vpop.xlane.xlu0 %444
        %v446 = vrot.slane %v445, 4
        %v447 = vadd.f32 %v445, %v446
        %v448 = vrot.slane %v447, 2
        %v449 = vadd.f32 %v447, %v448
        %v450 = vrot.slane %v449, 1
        %v451 = vadd.f32 %v449, %v450
        %v452 = vmul.f32 %v451, 0.00390625
        %v453 = vsub.f32 %v438, %v452
        %v454 = vmul.f32 %v453, %v453
        %v455 = vsel %vm321, %v454, 0.0
        %456 = vadd.xlane.f32.xlu0 %v455
        %v457 = vpop.xlane.xlu0 %456
        %v458 = vrot.slane %v457, 4
        %v459 = vadd.f32 %v457, %v458
        %v460 = vrot.slane %v459, 2
        %v461 = vadd.f32 %v459, %v460
        %v462 = vrot.slane %v461, 1
        %v463 = vadd.f32 %v461, %v462
        %v464 = vmul.f32 %v463, 0.003921569
        %v465 = vadd.f32 %v464, 1e-05
        %v466 = vrsqrt.pop %v465
        %v467 = vmul.f32 %v453, %v466
        %468 = vst.msk [vmem:[%s286] sm:$0xff] %vm321, %v467
        %v469 = vld [vmem:[%s301] sm:$0xff]
        %v470 = vpack.c.bf16 %v469, %v469
        %v471 = vld [vmem:[%s4] sm:$0xf]
        %v472 = vld [vmem:[%s4 + $0x4] sm:$0xf]
        %v473 = vld [vmem:[%s4 + $0x8] sm:$0xf]
        %v474 = vld [vmem:[%s4 + $0xc] sm:$0xf]
        %v479 = vunpack.c.l.b16 %v471
        %v480 = vunpack.c.l.b16 %v472
        %v481 = vunpack.c.l.b16 %v473
        %v482 = vunpack.c.l.b16 %v474
        %v483 = vpack.c.b16 %v480, %v479
        %v484 = vpack.c.b16 %v482, %v481
        %v488 = vsel %vm321, %v470, 0
        %490 = vmatprep.subr.bf16.mxu0 0
        %491 = vmatpush1.bf16.msra.mxu0 %v483
        %492 = vmatprep.subr.bf16.mxu0 0
        %493 = vmatpush1.bf16.msra.mxu0 %v484
        %494 = vmatprep.subr.bf16.mxu0 0
        %495 = vmatpush1.bf16.msra.mxu0 0
        %496 = vmatprep.subr.bf16.mxu0 0
        %497 = vmatpush1.bf16.msra.mxu0 0
        %498 = vmatprep.subr.bf16.mxu0 0
        %499 = vmatpush1.bf16.msra.mxu0 0
        %500 = vmatprep.subr.bf16.mxu0 0
        %501 = vmatpush1.bf16.msra.mxu0 0
        %502 = vmatprep.subr.bf16.mxu0 0
        %503 = vmatpush1.bf16.msra.mxu0 0
        %504 = vmatprep.subr.bf16.mxu0 0
        %505 = vmatpush1.bf16.msra.mxu0 0
        %506 = vmatprep.subr.bf16.mxu0 0
        %507 = vmatpush1.bf16.msra.mxu0 0
        %508 = vmatprep.subr.bf16.mxu0 0
        %509 = vmatpush1.bf16.msra.mxu0 0
        %510 = vmatprep.subr.bf16.mxu0 0
        %511 = vmatpush1.bf16.msra.mxu0 0
        %512 = vmatprep.subr.bf16.mxu0 0
        %513 = vmatpush1.bf16.msra.mxu0 0
        %514 = vmatprep.subr.bf16.mxu0 0
        %515 = vmatpush1.bf16.msra.mxu0 0
        %516 = vmatprep.subr.bf16.mxu0 0
        %517 = vmatpush1.bf16.msra.mxu0 0
        %518 = vmatprep.subr.bf16.mxu0 0
        %519 = vmatpush1.bf16.msra.mxu0 0
        %520 = vmatprep.subr.bf16.mxu0 0
        %521 = vmatpush1.bf16.msra.mxu0 0
        %522 = vmatprep.mubr.bf16.mxu0 0
        %523 = vmatmul.mubr.bf16.gmra.mrb[0].mxu0 %v488
        %v524 = vpop.f32.mrb[0].mxu0
        %v525 = vadd.f32 0.0, %v524
        %v526 = vpop.f32.mrb[0].mxu0
        %v527 = vpop.f32.mrb[0].mxu0
        %v528 = vpop.f32.mrb[0].mxu0
        %529 = vdwg.mxu0
        %v530 = vmax.f32 %v525, 0.0
        %v531 = vpack.c.bf16 %v530, %v530
        %v532 = vld [vmem:[%s5] sm:$0xf]
        %v533 = vld [vmem:[%s5 + $0x4] sm:$0xf]
        %v534 = vld [vmem:[%s5 + $0x8] sm:$0xf]
        %v535 = vld [vmem:[%s5 + $0xc] sm:$0xf]
        %v536 = vld [vmem:[%s5 + $0x10] sm:$0xf]
        %v537 = vld [vmem:[%s5 + $0x14] sm:$0xf]
        %v538 = vld [vmem:[%s5 + $0x18] sm:$0xf]
        %v539 = vld [vmem:[%s5 + $0x1c] sm:$0xf]
        %v548 = vunpack.c.l.b16 %v532
        %v549 = vunpack.c.l.b16 %v533
        %v550 = vunpack.c.l.b16 %v534
        %v551 = vunpack.c.l.b16 %v535
        %v552 = vunpack.c.l.b16 %v536
        %v553 = vunpack.c.l.b16 %v537
        %v554 = vunpack.c.l.b16 %v538
        %v555 = vunpack.c.l.b16 %v539
        %v556 = vpack.c.b16 %v549, %v548
        %v557 = vpack.c.b16 %v551, %v550
        %v558 = vpack.c.b16 %v553, %v552
        %v559 = vpack.c.b16 %v555, %v554
        %v565 = vsel %vm399, %v531, 0
        %567 = vmatprep.subr.bf16.mxu0 0
        %568 = vmatpush1.bf16.msra.mxu0 %v556
        %569 = vmatprep.subr.bf16.mxu0 0
        %570 = vmatpush1.bf16.msra.mxu0 %v557
        %571 = vmatprep.subr.bf16.mxu0 0
        %572 = vmatpush1.bf16.msra.mxu0 %v558
        %573 = vmatprep.subr.bf16.mxu0 0
        %574 = vmatpush1.bf16.msra.mxu0 %v559
        %575 = vmatprep.subr.bf16.mxu0 0
        %576 = vmatpush1.bf16.msra.mxu0 0
        %577 = vmatprep.subr.bf16.mxu0 0
        %578 = vmatpush1.bf16.msra.mxu0 0
        %579 = vmatprep.subr.bf16.mxu0 0
        %580 = vmatpush1.bf16.msra.mxu0 0
        %581 = vmatprep.subr.bf16.mxu0 0
        %582 = vmatpush1.bf16.msra.mxu0 0
        %583 = vmatprep.subr.bf16.mxu0 0
        %584 = vmatpush1.bf16.msra.mxu0 0
        %585 = vmatprep.subr.bf16.mxu0 0
        %586 = vmatpush1.bf16.msra.mxu0 0
        %587 = vmatprep.subr.bf16.mxu0 0
        %588 = vmatpush1.bf16.msra.mxu0 0
        %589 = vmatprep.subr.bf16.mxu0 0
        %590 = vmatpush1.bf16.msra.mxu0 0
        %591 = vmatprep.subr.bf16.mxu0 0
        %592 = vmatpush1.bf16.msra.mxu0 0
        %593 = vmatprep.subr.bf16.mxu0 0
        %594 = vmatpush1.bf16.msra.mxu0 0
        %595 = vmatprep.subr.bf16.mxu0 0
        %596 = vmatpush1.bf16.msra.mxu0 0
        %597 = vmatprep.subr.bf16.mxu0 0
        %598 = vmatpush1.bf16.msra.mxu0 0
        %599 = vmatprep.mubr.bf16.mxu0 0
        %600 = vmatmul.mubr.bf16.gmra.mrb[0].mxu0 %v565
        %v601 = vpop.f32.mrb[0].mxu0
        %v602 = vadd.f32 %v469, %v601
        %v603 = vpop.f32.mrb[0].mxu0
        %v604 = vpop.f32.mrb[0].mxu0
        %v605 = vpop.f32.mrb[0].mxu0
        %606 = vdwg.mxu0
        %v607 = vsel %vm321, %v602, 0.0
        %608 = vadd.xlane.f32.xlu0 %v607
        %v609 = vpop.xlane.xlu0 %608
        %v610 = vrot.slane %v609, 4
        %v611 = vadd.f32 %v609, %v610
        %v612 = vrot.slane %v611, 2
        %v613 = vadd.f32 %v611, %v612
        %v614 = vrot.slane %v613, 1
        %v615 = vadd.f32 %v613, %v614
        %v616 = vmul.f32 %v615, 0.00390625
        %v617 = vsub.f32 %v602, %v616
        %v618 = vmul.f32 %v617, %v617
        %v619 = vsel %vm321, %v618, 0.0
        %620 = vadd.xlane.f32.xlu0 %v619
        %v621 = vpop.xlane.xlu0 %620
        %v622 = vrot.slane %v621, 4
        %v623 = vadd.f32 %v621, %v622
        %v624 = vrot.slane %v623, 2
        %v625 = vadd.f32 %v623, %v624
        %v626 = vrot.slane %v625, 1
        %v627 = vadd.f32 %v625, %v626
        %v628 = vmul.f32 %v627, 0.003921569
        %v629 = vadd.f32 %v628, 1e-05
        %v630 = vrsqrt.pop %v629
        %v631 = vmul.f32 %v617, %v630
        %632 = vst.msk [vmem:[%s293] sm:$0xff] %vm321, %v631
        %s633 = sand.u32 %s169, 1
        %s634 = scalar_lea.sflag [#allocation3], %s633
        %s635 = sand.u32 %s169, 1
        %s636 = smul.addr %s635, 8
        %s637 = scalar_lea.vmem [#allocation2], %s636
        %s638 = sand.u32 %s195, 1
        %s639 = scalar_lea.sflag [#allocation5], %s638
        %s640 = sand.u32 %s195, 1
        %s641 = smul.addr %s640, 8
        %s642 = scalar_lea.vmem [#allocation4], %s641
        // Predicated region
        $region45: #{tpu_custom_call.1} parent=43 // pred_check
          %p643 = pneg %p179
        $region46: #{tpu_custom_call.1} parent=43 // pred_check_branch
          %645 = sbr.rel (%p643) target = $region48
        $region47: #{tpu_custom_call.1} parent=43 // pred_region
          %s647 = ssub.s32 128, 128
          %648 = vsyncadd %s634, %s647
          %s649 = smul.addr %s25, 128
          %s650 = scalar_lea.hbm %s6, %s649
          %s652 = sshll.u32 %s637, 4
          %s653 = int_to_ptr.vmem [resolvable:$true] %s652
          %655 = dma.vmem_to_hbm [thread:$0]  %s653, 128, %s650, %s634
        $region48: #{tpu_custom_call.1} parent=43 // pred_fallthru
          _
        // Predicated region
        $region49: #{tpu_custom_call.1} parent=43 // pred_check
          %p656 = pneg %p205
        $region50: #{tpu_custom_call.1} parent=43 // pred_check_branch
          %658 = sbr.rel (%p656) target = $region52
        $region51: #{tpu_custom_call.1} parent=43 // pred_region
          %s660 = ssub.s32 128, 128
          %661 = vsyncadd %s639, %s660
          %s662 = smul.addr %s25, 128
          %s663 = scalar_lea.hbm %s7, %s662
          %s665 = sshll.u32 %s642, 4
          %s666 = int_to_ptr.vmem [resolvable:$true] %s665
          %668 = dma.vmem_to_hbm [thread:$0]  %s666, 128, %s663, %s639
        $region52: #{tpu_custom_call.1} parent=43 // pred_fallthru
          _
      $region44: #{tpu_custom_call.1} parent=5 // pred_fallthru
        _
      %p669 = scmp.le.s32.totalorder 2, %s20
      // Predicated region
      $region53: #{tpu_custom_call.1} parent=5 // pred_check
        %p670 = pneg %p669
      $region54: #{tpu_custom_call.1} parent=5 // pred_check_branch
        %672 = sbr.rel (%p670) target = $region56
      $region55: #{tpu_custom_call.1} parent=5 // pred_region
        %s673 = ssub.s32 %s20, 2
        // Predicated region
        $region57: #{tpu_custom_call.1} parent=55 // pred_check
          %p674 = pneg %p185
        $region58: #{tpu_custom_call.1} parent=55 // pred_check_branch
          %676 = sbr.rel (%p674) target = $region60
        $region59: #{tpu_custom_call.1} parent=55 // pred_region
          %s677 = sand.u32 %s170, 1
          %s678 = scalar_lea.sflag [#allocation3], %s677
          %s679 = sand.u32 %s170, 1
          %s680 = smul.addr %s679, 8
          %s681 = scalar_lea.vmem [#allocation2], %s680
          %682 = dma.done %s678, 128
        $region60: #{tpu_custom_call.1} parent=55 // pred_fallthru
          _
        // Predicated region
        $region61: #{tpu_custom_call.1} parent=55 // pred_check
          %p683 = pneg %p211
        $region62: #{tpu_custom_call.1} parent=55 // pred_check_branch
          %685 = sbr.rel (%p683) target = $region64
        $region63: #{tpu_custom_call.1} parent=55 // pred_region
          %s686 = sand.u32 %s196, 1
          %s687 = scalar_lea.sflag [#allocation5], %s686
          %s688 = sand.u32 %s196, 1
          %s689 = smul.addr %s688, 8
          %s690 = scalar_lea.vmem [#allocation4], %s689
          %691 = dma.done %s687, 128
        $region64: #{tpu_custom_call.1} parent=55 // pred_fallthru
          _
      $region56: #{tpu_custom_call.1} parent=5 // pred_fallthru
        _
    $region6: #{tpu_custom_call.1} parent=1 // loop_footer
      %s24 = sadd.s32 1, %s20
    $region7: #{tpu_custom_call.1} parent=1 // loop_footer_branch
      %19 = sbr.rel target = $region3
    $region8: #{tpu_custom_call.1} parent=1 // loop_exit
      _
    %692 = vsyncpa [#allocation3], 1
    %s693 = scalar_lea.sflag [#allocation3], 1
    %694 = vsyncpa %s693, 1
    %695 = vsyncpa [#allocation5], 1
    %s696 = scalar_lea.sflag [#allocation5], 1
    %697 = vsyncpa %s696, 1

</llo_original>
